<compile_context>
chip_gen: v5e
topology: v5e:2x2
jax: 0.10.0
libtpu: 0.0.40
codegen_flags: <defaults>
</compile_context>

<pallas_src>
import jax
import jax.numpy as jnp
from jax.experimental import pallas as pl
from jax.experimental.pallas import tpu as pltpu


def _round_up(a, b):
    return (a + b - 1) // b * b


def _pad_cols(m, width, dtype):
    """Cast to dtype and zero-pad the last dim up to `width`."""
    m = m.astype(dtype)
    pad = width - m.shape[-1]
    if pad > 0:
        m = jnp.pad(m, ((0, 0), (0, pad)))
    return m


def _invariant_spec(block_shape, index_map):
    """BlockSpec for a grid-invariant operand: single-buffered if supported."""
    try:
        return pl.BlockSpec(block_shape, index_map, pipeline_mode=pl.Buffered(1))
    except TypeError:  # older Pallas without pipeline_mode kwarg
        return pl.BlockSpec(block_shape, index_map)


def attn_gated_kernel(x_ref, wab_ref, bab_ref, wct_ref, bc_ref, A_ref):
    two_dp = wab_ref.shape[1]
    Dp = two_dp // 2                 # padded per-gate width, multiple of 128
    n_classes = wct_ref.shape[0]

    x = x_ref[...]                                        # (tm, L)
    # Fused first layer: ONE MXU matmul for both gates, f32 accumulation.
    h = (jnp.dot(x, wab_ref[...], preferred_element_type=jnp.float32)
         + bab_ref[...])                                  # (tm, 2*Dp) f32
    # Dp is a multiple of 128 -> both slices are lane-tile aligned (no relayout).
    a = jnp.tanh(h[:, :Dp])                               # attention_a
    # sigmoid(z) == 0.5 * tanh(0.5*z) + 0.5 : 1 EUP op instead of exp + divide.
    b = 0.5 * jnp.tanh(0.5 * h[:, Dp:]) + 0.5             # attention_b
    g = a * b                                             # gated product (tm, Dp)

    if n_classes == 1:
        # (tm, Dp) @ (Dp, 1) would use 1 MXU column; do it on the VPU (mul)
        # + XLU (lane reduce) instead — those slots have slack here.
        A = jnp.sum(g * wct_ref[...], axis=-1, keepdims=True) + bc_ref[...]
    else:
        # g @ Wc with Wc stored transposed as (n_classes, Dp)  (trans_b matmul).
        A = jax.lax.dot_general(
            g, wct_ref[...],
            dimension_numbers=(((1,), (1,)), ((), ())),
            preferred_element_type=jnp.float32) + bc_ref[...]
    A_ref[...] = A.astype(A_ref.dtype)


def attn_net_gated(x, wa, ba, wb, bb, wc, bc, *, tm=None,
                   compute_dtype=jnp.bfloat16):
    """Gated-attention forward. Returns (A, x) like the PyTorch module.

    x:  (N, L)            wa, wb: (L, D)        ba, bb: (1, D) or (D,)
    wc: (D, n_classes)    bc: (1, n_classes) or (n_classes,)
    tm: row tile (auto: 2048 bf16 / 1024 f32, shrunk to fit VMEM).
    compute_dtype: dtype for x and the fused first-layer weight (default
        bf16; accumulation and activation math stay f32). Pass the input
        already in bf16 to avoid the wrapper-side cast (one HBM pass). Use
        compute_dtype=None to compute in x.dtype.
    """
    N, L = x.shape
    D = wa.shape[1]
    n_classes = wc.shape[1]
    out_dtype = x.dtype
    if compute_dtype is None:
        compute_dtype = x.dtype
    compute_dtype = jnp.dtype(compute_dtype)

    # Pad each gate's width to a multiple of 128 so the in-kernel split of the
    # fused activation is lane-aligned. Padded columns have zero weight & bias
    # -> tanh(0) = 0 -> gated product is 0, and Wc^T is zero-padded too, so
    # they never contribute to the output.
    Dp = _round_up(D, 128)

    wab = jnp.concatenate([_pad_cols(wa, Dp, compute_dtype),
                           _pad_cols(wb, Dp, compute_dtype)], axis=1)   # (L, 2Dp)
    bab = jnp.concatenate([_pad_cols(ba.reshape(1, D), Dp, jnp.float32),
                           _pad_cols(bb.reshape(1, D), Dp, jnp.float32)],
                          axis=1)                                       # (1, 2Dp)
    wct = _pad_cols(jnp.transpose(wc), Dp, jnp.float32)                 # (nc, Dp)
    bc2 = bc.reshape(1, n_classes).astype(jnp.float32)                  # (1, nc)

    x_c = x if x.dtype == compute_dtype else x.astype(compute_dtype)

    # Row tile: big enough to amortize per-step pipeline overhead.
    itemsize = compute_dtype.itemsize
    out_itemsize = jnp.dtype(out_dtype).itemsize
    row_align = 16 if itemsize == 2 else 8
    if tm is None:
        tm = 2048 if itemsize == 2 else 1024
    tm = max(row_align, _round_up(min(tm, N), row_align))

    # Per-generation VMEM cap (3/4 of physical: ~96 MiB v5e/v6e, ~48 MiB v7x).
    try:
        cap_phys = int(pltpu.get_tpu_info().vmem_capacity_bytes)
    except Exception:
        cap_phys = 64 << 20                       # v7x-safe fallback
    vmem_cap = max(32 << 20, (cap_phys * 3) // 4)

    def _vmem_bytes(tm_):
        return (2 * tm_ * L * itemsize                                   # x tiles (2 bufs)
                + 2 * tm_ * _round_up(n_classes, 128) * out_itemsize     # out tiles
                + (L * 2 * Dp) * itemsize                                # fused W (1 buf)
                + (2 * Dp + n_classes * Dp + 128) * 4                    # biases / Wc^T
                + 4 * tm_ * 2 * Dp * 4)                                  # f32 intermediates

    while tm > row_align and _vmem_bytes(tm) > vmem_cap:
        tm = max(row_align, _round_up(tm // 2, row_align))
    vmem_limit = int(min(max((_vmem_bytes(tm) * 5) // 4, 32 << 20), vmem_cap))

    grid = (pl.cdiv(N, tm),)   # ragged last block handled by Pallas (no pad copy)

    A = pl.pallas_call(
        attn_gated_kernel,
        out_shape=jax.ShapeDtypeStruct((N, n_classes), out_dtype),
        grid_spec=pltpu.PrefetchScalarGridSpec(
            num_scalar_prefetch=0,
            grid=grid,
            in_specs=[
                pl.BlockSpec((tm, L), lambda i: (i, 0)),           # x row-tile
                _invariant_spec((L, 2 * Dp), lambda i: (0, 0)),    # fused Wa|Wb
                _invariant_spec((1, 2 * Dp), lambda i: (0, 0)),    # fused ba|bb
                _invariant_spec((n_classes, Dp), lambda i: (0, 0)),  # Wc^T
                _invariant_spec((1, n_classes), lambda i: (0, 0)),   # bc
            ],
            out_specs=pl.BlockSpec((tm, n_classes), lambda i: (i, 0)),
        ),
        compiler_params=pltpu.CompilerParams(
            dimension_semantics=("parallel",),   # row axis shards across TCs (v7x)
            vmem_limit_bytes=vmem_limit),
    )(x_c, wab, bab, wct, bc2)

    return A, x


def init_params(key, L, D, n_classes, dtype=jnp.float32):
    """Deterministic synthetic init (uniform, PyTorch-Linear-like bounds)."""
    ks = jax.random.split(key, 6)
    bnd_L = 1.0 / jnp.sqrt(L)
    bnd_D = 1.0 / jnp.sqrt(D)
    wa = jax.random.uniform(ks[0], (L, D), dtype, -bnd_L, bnd_L)
    ba = jax.random.uniform(ks[1], (1, D), dtype, -bnd_L, bnd_L)
    wb = jax.random.uniform(ks[2], (L, D), dtype, -bnd_L, bnd_L)
    bb = jax.random.uniform(ks[3], (1, D), dtype, -bnd_L, bnd_L)
    wc = jax.random.uniform(ks[4], (D, n_classes), dtype, -bnd_D, bnd_D)
    bc = jax.random.uniform(ks[5], (1, n_classes), dtype, -bnd_D, bnd_D)
    return wa, ba, wb, bb, wc, bc


if __name__ == "__main__":
    # TODO(synk): module's optional dropout=True branch (p=0.25) not implemented;
    # this matches the default dropout=False forward.
    key = jax.random.PRNGKey(0)

    def reference(x, wa, ba, wb, bb, wc, bc):
        a = jnp.tanh(x @ wa + ba)
        b = jax.nn.sigmoid(x @ wb + bb)
        return (a * b) @ wc + bc

    # --- test 1: small shapes, n_classes > 1 (MXU tail), f32 compute ---------
    N, L, D, n_classes = 64, 256, 128, 4
    k1, k2, key = jax.random.split(key, 3)
    x = jax.random.normal(k1, (N, L), jnp.float32)
    params = init_params(k2, L, D, n_classes)
    A, x_out = attn_net_gated(x, *params, compute_dtype=None)
    A = jax.block_until_ready(A)
    x_out = jax.block_until_ready(x_out)
    A_ref = reference(x, *params)
    assert A.shape == (N, n_classes) and x_out.shape == (N, L)
    assert jnp.allclose(A, A_ref, atol=1e-4, rtol=1e-4), \
        float(jnp.max(jnp.abs(A - A_ref)))
    assert jnp.array_equal(x_out, x)

    # --- test 2: ragged N (no pad copy), n_classes==1 VPU/XLU tail, bf16 -----
    N, L, D, n_classes = 300, 512, 256, 1
    k1, k2, key = jax.random.split(key, 3)
    x = jax.random.normal(k1, (N, L), jnp.float32)
    params = init_params(k2, L, D, n_classes)
    A, x_out = attn_net_gated(x, *params)            # default bf16 compute
    A = jax.block_until_ready(A)
    A_ref = reference(x, *params)
    assert A.shape == (N, n_classes) and x_out.shape == (N, L)
    assert jnp.allclose(A, A_ref, atol=3e-2, rtol=3e-2), \
        float(jnp.max(jnp.abs(A - A_ref)))
    assert jnp.array_equal(x_out, x)

    # --- test 3: same shapes, f32 compute path, tight tolerance --------------
    A32, _ = attn_net_gated(x, *params, compute_dtype=None)
    A32 = jax.block_until_ready(A32)
    assert jnp.allclose(A32, A_ref, atol=1e-4, rtol=1e-4), \
        float(jnp.max(jnp.abs(A32 - A_ref)))

    print("KERNEL_OK")
</pallas_src>

<mosaic_0001>
module attributes {stable_mosaic.version = 11 : i64} {
  func.func @attn_gated_kernel(%arg0: i32, %arg1: memref<64x256xf32, #tpu.memory_space<vmem>>, %arg2: memref<256x256xf32, #tpu.memory_space<vmem>>, %arg3: memref<1x256xf32, #tpu.memory_space<vmem>>, %arg4: memref<4x128xf32, #tpu.memory_space<vmem>>, %arg5: memref<1x4xf32, #tpu.memory_space<vmem>>, %arg6: memref<64x4xf32, #tpu.memory_space<vmem>>) attributes {dimension_semantics = [#tpu.dimension_semantics<parallel>], iteration_bounds = array<i64: 1>, scalar_prefetch = 0 : i64, scratch_operands = 0 : i64, tpu.core_type = #tpu.core_type<tc>, window_params = [{transform_indices = @transform_0, window_bounds = array<i64: 64, 256>}, {pipeline_mode = #tpu.pipeline_mode<synchronous>, transform_indices = @transform_1, window_bounds = array<i64: 256, 256>}, {pipeline_mode = #tpu.pipeline_mode<synchronous>, transform_indices = @transform_2, window_bounds = array<i64: 1, 256>}, {pipeline_mode = #tpu.pipeline_mode<synchronous>, transform_indices = @transform_3, window_bounds = array<i64: 4, 128>}, {pipeline_mode = #tpu.pipeline_mode<synchronous>, transform_indices = @transform_4, window_bounds = array<i64: 1, 4>}, {transform_indices = @transform_5, window_bounds = array<i64: 64, 4>}]} {
    %c0 = arith.constant 0 : index
    %c0_0 = arith.constant 0 : index
    %0 = vector.load %arg1[%c0, %c0_0] : memref<64x256xf32, #tpu.memory_space<vmem>>, vector<64x256xf32>
    %c0_1 = arith.constant 0 : index
    %c0_2 = arith.constant 0 : index
    %1 = vector.load %arg2[%c0_1, %c0_2] : memref<256x256xf32, #tpu.memory_space<vmem>>, vector<256x256xf32>
    %cst = arith.constant dense<0.000000e+00> : vector<64x256xf32>
    %2 = tpu.matmul %0, %1, %cst {dimension_numbers = #tpu.dot_dimension_numbers<[1], [0], [0], [1], [0, 0, 1, 1], [], []>} : vector<64x256xf32>, vector<256x256xf32>, vector<64x256xf32> -> vector<64x256xf32>
    %c0_3 = arith.constant 0 : index
    %c0_4 = arith.constant 0 : index
    %3 = vector.load %arg3[%c0_3, %c0_4] : memref<1x256xf32, #tpu.memory_space<vmem>>, vector<1x256xf32>
    %4 = vector.broadcast %3 : vector<1x256xf32> to vector<64x256xf32>
    %5 = arith.addf %2, %4 : vector<64x256xf32>
    %6 = vector.extract_strided_slice %5 {offsets = [0, 0], sizes = [64, 128], strides = [1, 1]} : vector<64x256xf32> to vector<64x128xf32>
    %7 = math.tanh %6 : vector<64x128xf32>
    %8 = vector.extract_strided_slice %5 {offsets = [0, 128], sizes = [64, 128], strides = [1, 1]} : vector<64x256xf32> to vector<64x128xf32>
    %cst_5 = arith.constant 5.000000e-01 : f32
    %9 = vector.broadcast %cst_5 : f32 to vector<64x128xf32>
    %10 = arith.mulf %9, %8 : vector<64x128xf32>
    %11 = math.tanh %10 : vector<64x128xf32>
    %cst_6 = arith.constant 5.000000e-01 : f32
    %12 = vector.broadcast %cst_6 : f32 to vector<64x128xf32>
    %13 = arith.mulf %12, %11 : vector<64x128xf32>
    %cst_7 = arith.constant 5.000000e-01 : f32
    %14 = vector.broadcast %cst_7 : f32 to vector<64x128xf32>
    %15 = arith.addf %13, %14 : vector<64x128xf32>
    %16 = arith.mulf %7, %15 : vector<64x128xf32>
    %c0_8 = arith.constant 0 : index
    %c0_9 = arith.constant 0 : index
    %17 = vector.load %arg4[%c0_8, %c0_9] : memref<4x128xf32, #tpu.memory_space<vmem>>, vector<4x128xf32>
    %cst_10 = arith.constant dense<0.000000e+00> : vector<64x4xf32>
    %18 = tpu.matmul %16, %17, %cst_10 {dimension_numbers = #tpu.dot_dimension_numbers<[1], [1], [0], [0], [0, 0, 1, 0], [], []>} : vector<64x128xf32>, vector<4x128xf32>, vector<64x4xf32> -> vector<64x4xf32>
    %c0_11 = arith.constant 0 : index
    %c0_12 = arith.constant 0 : index
    %19 = vector.load %arg5[%c0_11, %c0_12] : memref<1x4xf32, #tpu.memory_space<vmem>>, vector<1x4xf32>
    %20 = vector.broadcast %19 : vector<1x4xf32> to vector<64x4xf32>
    %21 = arith.addf %18, %20 : vector<64x4xf32>
    %c0_13 = arith.constant 0 : index
    %c0_14 = arith.constant 0 : index
    %22 = vector.load %arg6[%c0_13, %c0_14] : memref<64x4xf32, #tpu.memory_space<vmem>>, vector<64x4xf32>
    tpu.vector_store %arg6[%c0_13, %c0_14], %21 {strides = array<i32>} : memref<64x4xf32, #tpu.memory_space<vmem>>, vector<64x4xf32>,
    return
  }
  func.func @transform_0(%arg0: i32) -> (i32, i32) {
    %c0_i32 = arith.constant 0 : i32
    %c0_i32_0 = arith.constant 0 : i32
    return %arg0, %c0_i32 : i32, i32
  }
  func.func @transform_1(%arg0: i32) -> (i32, i32) {
    %c0_i32 = arith.constant 0 : i32
    %c0_i32_0 = arith.constant 0 : i32
    %c0_i32_1 = arith.constant 0 : i32
    return %c0_i32, %c0_i32_0 : i32, i32
  }
  func.func @transform_2(%arg0: i32) -> (i32, i32) {
    %c0_i32 = arith.constant 0 : i32
    %c0_i32_0 = arith.constant 0 : i32
    %c0_i32_1 = arith.constant 0 : i32
    return %c0_i32, %c0_i32_0 : i32, i32
  }
  func.func @transform_3(%arg0: i32) -> (i32, i32) {
    %c0_i32 = arith.constant 0 : i32
    %c0_i32_0 = arith.constant 0 : i32
    %c0_i32_1 = arith.constant 0 : i32
    return %c0_i32, %c0_i32_0 : i32, i32
  }
  func.func @transform_4(%arg0: i32) -> (i32, i32) {
    %c0_i32 = arith.constant 0 : i32
    %c0_i32_0 = arith.constant 0 : i32
    %c0_i32_1 = arith.constant 0 : i32
    return %c0_i32, %c0_i32_0 : i32, i32
  }
  func.func @transform_5(%arg0: i32) -> (i32, i32) {
    %c0_i32 = arith.constant 0 : i32
    %c0_i32_0 = arith.constant 0 : i32
    return %arg0, %c0_i32 : i32, i32
  }
}

</mosaic_0001>

<llo_original>
// kernel: tpu_custom_call.1
$region0: #{tpu_custom_call.1}
  #allocation0 [shape = 'u32[]', space=smem, size = 0x4, offset = 0x4, fixed_abs, tag = 'smem constant byte address 0x4 - core index']
  #allocation1 [shape = 'u32[72,128]{1,0:T(1,128)}', space=vmem, size = 0x9000, scoped, tag = 'internal scratch']
  %s0 = inlined_call_operand.hbm [shape: f32[64,256], index: 0, kind: input, shape index: {}]
  %s1 = inlined_call_operand.hbm [shape: f32[256,256], index: 1, kind: input, shape index: {}]
  %s2 = inlined_call_operand.hbm [shape: f32[1,256], index: 2, kind: input, shape index: {}]
  %s3 = inlined_call_operand.hbm [shape: f32[4,128], index: 3, kind: input, shape index: {}]
  %s4 = inlined_call_operand.vmem [shape: f32[1,4], index: 4, kind: input, shape index: {}]
  %s5 = inlined_call_operand.vmem [shape: f32[64,4], index: 5, kind: output, shape index: {}]
  %s6 = sld [smem:[#allocation0]]
  $region46: #{tpu_custom_call.1} parent=0
    _
  %s8 = ssub.s32 1, %s6
  %s9 = scalar_select 0, %s8, %s6
  $region1: #{tpu_custom_call.1} parent=0
    #allocation2 [shape = 'u8[65536]{0}', space=vmem, size = 0x10000, scoped, tag = 'input window, operand 0, single buffered']
    #allocation3 [shape = 's32[1]{0}', space=sflag, size = 0x4, scoped, tag = 'scoped memory for tpu_custom_call.1']
    #allocation4 [shape = 'u8[262144]{0}', space=vmem, size = 0x40000, scoped, tag = 'input window, operand 1, single buffered']
    #allocation5 [shape = 's32[1]{0}', space=sflag, size = 0x4, scoped, tag = 'scoped memory for tpu_custom_call.1']
    #allocation6 [shape = 'u8[1024]{0}', space=vmem, size = 0x400, scoped, tag = 'input window, operand 2, single buffered']
    #allocation7 [shape = 'u8[2048]{0}', space=vmem, size = 0x800, scoped, tag = 'input window, operand 3, single buffered']
    #allocation8 [shape = 's32[1]{0}', space=sflag, size = 0x4, scoped, tag = 'scoped memory for tpu_custom_call.1']
    %10 = vsyncpa [#allocation3], 0
    %11 = vsyncpa [#allocation5], 0
    %12 = vsyncpa [#allocation8], 0
    // Predicated region
    $region2: #{tpu_custom_call.1} parent=1 // pred_check
      _
    $region3: #{tpu_custom_call.1} parent=1 // pred_check_branch
      %14 = sbr.rel (0) target = $region5
    $region4: #{tpu_custom_call.1} parent=1 // pred_region
      %16 = vsyncadd [#allocation3], 0
      %s17 = sshll.u32 %s0, 4
      %s18 = int_to_ptr.hbm [resolvable:$true] %s17
      %s19 = sshll.u32 [#allocation2], 4
      %s20 = int_to_ptr.vmem [resolvable:$true] %s19
      %25 = dma.hbm_to_vmem [thread:$0]  %s18, 2048, %s20, [#allocation3], 256, 256, 16
    $region5: #{tpu_custom_call.1} parent=1 // pred_fallthru
      _
    // Predicated region
    $region6: #{tpu_custom_call.1} parent=1 // pred_check
      _
    $region7: #{tpu_custom_call.1} parent=1 // pred_check_branch
      %27 = sbr.rel (0) target = $region9
    $region8: #{tpu_custom_call.1} parent=1 // pred_region
      %29 = vsyncadd [#allocation5], 0
      %s30 = sshll.u32 %s1, 4
      %s31 = int_to_ptr.hbm [resolvable:$true] %s30
      %s32 = sshll.u32 [#allocation4], 4
      %s33 = int_to_ptr.vmem [resolvable:$true] %s32
      %38 = dma.hbm_to_vmem [thread:$0]  %s31, 8192, %s33, [#allocation5], 256, 256, 16
    $region9: #{tpu_custom_call.1} parent=1 // pred_fallthru
      _
    // Predicated region
    $region10: #{tpu_custom_call.1} parent=1 // pred_check
      _
    $region11: #{tpu_custom_call.1} parent=1 // pred_check_branch
      %40 = sbr.rel (0) target = $region13
    $region12: #{tpu_custom_call.1} parent=1 // pred_region
      %42 = vsyncadd [#allocation5], 0
      %s44 = sshll.u32 %s2, 4
      %s45 = int_to_ptr.hbm [resolvable:$true] %s44
      %s46 = sshll.u32 [#allocation6], 4
      %s47 = int_to_ptr.vmem [resolvable:$true] %s46
      %49 = dma.hbm_to_vmem [thread:$0]  %s45, 32, %s47, [#allocation5]
    $region13: #{tpu_custom_call.1} parent=1 // pred_fallthru
      _
    // Predicated region
    $region14: #{tpu_custom_call.1} parent=1 // pred_check
      _
    $region15: #{tpu_custom_call.1} parent=1 // pred_check_branch
      %51 = sbr.rel (0) target = $region17
    $region16: #{tpu_custom_call.1} parent=1 // pred_region
      %53 = vsyncadd [#allocation8], 0
      %s55 = sshll.u32 %s3, 4
      %s56 = int_to_ptr.hbm [resolvable:$true] %s55
      %s57 = sshll.u32 [#allocation7], 4
      %s58 = int_to_ptr.vmem [resolvable:$true] %s57
      %60 = dma.hbm_to_vmem [thread:$0]  %s56, 64, %s58, [#allocation8]
    $region17: #{tpu_custom_call.1} parent=1 // pred_fallthru
      _
    // Predicated region
    $region18: #{tpu_custom_call.1} parent=1 // pred_check
      _
    $region19: #{tpu_custom_call.1} parent=1 // pred_check_branch
      %62 = sbr.rel (0) target = $region21
    $region20: #{tpu_custom_call.1} parent=1 // pred_region
      _
    $region21: #{tpu_custom_call.1} parent=1 // pred_fallthru
      _
    // Predicated region
    $region22: #{tpu_custom_call.1} parent=1 // pred_check
      _
    $region23: #{tpu_custom_call.1} parent=1 // pred_check_branch
      %64 = sbr.rel (0) target = $region25
    $region24: #{tpu_custom_call.1} parent=1 // pred_region
      %66 = dma.done [#allocation3], 2048
    $region25: #{tpu_custom_call.1} parent=1 // pred_fallthru
      _
    // Predicated region
    $region26: #{tpu_custom_call.1} parent=1 // pred_check
      _
    $region27: #{tpu_custom_call.1} parent=1 // pred_check_branch
      %68 = sbr.rel (0) target = $region29
    $region28: #{tpu_custom_call.1} parent=1 // pred_region
      %70 = dma.done [#allocation5], 8192
    $region29: #{tpu_custom_call.1} parent=1 // pred_fallthru
      _
    // Predicated region
    $region30: #{tpu_custom_call.1} parent=1 // pred_check
      _
    $region31: #{tpu_custom_call.1} parent=1 // pred_check_branch
      %72 = sbr.rel (0) target = $region33
    $region32: #{tpu_custom_call.1} parent=1 // pred_region
      %74 = dma.done [#allocation5], 32
    $region33: #{tpu_custom_call.1} parent=1 // pred_fallthru
      _
    // Predicated region
    $region34: #{tpu_custom_call.1} parent=1 // pred_check
      _
    $region35: #{tpu_custom_call.1} parent=1 // pred_check_branch
      %76 = sbr.rel (0) target = $region37
    $region36: #{tpu_custom_call.1} parent=1 // pred_region
      %78 = dma.done [#allocation8], 64
    $region37: #{tpu_custom_call.1} parent=1 // pred_fallthru
      _
    %v79 = vld [vmem:[#allocation2] sm:$0xff]
    %v80 = vld [vmem:[#allocation2 + $0x8] sm:$0xff]
    %v81 = vld [vmem:[#allocation2 + $0x10] sm:$0xff]
    %v82 = vld [vmem:[#allocation2 + $0x18] sm:$0xff]
    %v83 = vld [vmem:[#allocation2 + $0x20] sm:$0xff]
    %v84 = vld [vmem:[#allocation2 + $0x28] sm:$0xff]
    %v85 = vld [vmem:[#allocation2 + $0x30] sm:$0xff]
    %v86 = vld [vmem:[#allocation2 + $0x38] sm:$0xff]
    %v87 = vld [vmem:[#allocation2 + $0x40] sm:$0xff]
    %v88 = vld [vmem:[#allocation2 + $0x48] sm:$0xff]
    %v89 = vld [vmem:[#allocation2 + $0x50] sm:$0xff]
    %v90 = vld [vmem:[#allocation2 + $0x58] sm:$0xff]
    %v91 = vld [vmem:[#allocation2 + $0x60] sm:$0xff]
    %v92 = vld [vmem:[#allocation2 + $0x68] sm:$0xff]
    %v93 = vld [vmem:[#allocation2 + $0x70] sm:$0xff]
    %v94 = vld [vmem:[#allocation2 + $0x78] sm:$0xff]
    %v95 = vld [vmem:[#allocation4] sm:$0xff]
    %v96 = vld [vmem:[#allocation4 + $0x8] sm:$0xff]
    %v97 = vld [vmem:[#allocation4 + $0x10] sm:$0xff]
    %v98 = vld [vmem:[#allocation4 + $0x18] sm:$0xff]
    %v99 = vld [vmem:[#allocation4 + $0x20] sm:$0xff]
    %v100 = vld [vmem:[#allocation4 + $0x28] sm:$0xff]
    %v101 = vld [vmem:[#allocation4 + $0x30] sm:$0xff]
    %v102 = vld [vmem:[#allocation4 + $0x38] sm:$0xff]
    %v103 = vld [vmem:[#allocation4 + $0x40] sm:$0xff]
    %v104 = vld [vmem:[#allocation4 + $0x48] sm:$0xff]
    %v105 = vld [vmem:[#allocation4 + $0x50] sm:$0xff]
    %v106 = vld [vmem:[#allocation4 + $0x58] sm:$0xff]
    %v107 = vld [vmem:[#allocation4 + $0x60] sm:$0xff]
    %v108 = vld [vmem:[#allocation4 + $0x68] sm:$0xff]
    %v109 = vld [vmem:[#allocation4 + $0x70] sm:$0xff]
    %v110 = vld [vmem:[#allocation4 + $0x78] sm:$0xff]
    %v111 = vld [vmem:[#allocation4 + $0x80] sm:$0xff]
    %v112 = vld [vmem:[#allocation4 + $0x88] sm:$0xff]
    %v113 = vld [vmem:[#allocation4 + $0x90] sm:$0xff]
    %v114 = vld [vmem:[#allocation4 + $0x98] sm:$0xff]
    %v115 = vld [vmem:[#allocation4 + $0xa0] sm:$0xff]
    %v116 = vld [vmem:[#allocation4 + $0xa8] sm:$0xff]
    %v117 = vld [vmem:[#allocation4 + $0xb0] sm:$0xff]
    %v118 = vld [vmem:[#allocation4 + $0xb8] sm:$0xff]
    %v119 = vld [vmem:[#allocation4 + $0xc0] sm:$0xff]
    %v120 = vld [vmem:[#allocation4 + $0xc8] sm:$0xff]
    %v121 = vld [vmem:[#allocation4 + $0xd0] sm:$0xff]
    %v122 = vld [vmem:[#allocation4 + $0xd8] sm:$0xff]
    %v123 = vld [vmem:[#allocation4 + $0xe0] sm:$0xff]
    %v124 = vld [vmem:[#allocation4 + $0xe8] sm:$0xff]
    %v125 = vld [vmem:[#allocation4 + $0xf0] sm:$0xff]
    %v126 = vld [vmem:[#allocation4 + $0xf8] sm:$0xff]
    %v127 = vld [vmem:[#allocation4 + $0x100] sm:$0xff]
    %v128 = vld [vmem:[#allocation4 + $0x108] sm:$0xff]
    %v129 = vld [vmem:[#allocation4 + $0x110] sm:$0xff]
    %v130 = vld [vmem:[#allocation4 + $0x118] sm:$0xff]
    %v131 = vld [vmem:[#allocation4 + $0x120] sm:$0xff]
    %v132 = vld [vmem:[#allocation4 + $0x128] sm:$0xff]
    %v133 = vld [vmem:[#allocation4 + $0x130] sm:$0xff]
    %v134 = vld [vmem:[#allocation4 + $0x138] sm:$0xff]
    %v135 = vld [vmem:[#allocation4 + $0x140] sm:$0xff]
    %v136 = vld [vmem:[#allocation4 + $0x148] sm:$0xff]
    %v137 = vld [vmem:[#allocation4 + $0x150] sm:$0xff]
    %v138 = vld [vmem:[#allocation4 + $0x158] sm:$0xff]
    %v139 = vld [vmem:[#allocation4 + $0x160] sm:$0xff]
    %v140 = vld [vmem:[#allocation4 + $0x168] sm:$0xff]
    %v141 = vld [vmem:[#allocation4 + $0x170] sm:$0xff]
    %v142 = vld [vmem:[#allocation4 + $0x178] sm:$0xff]
    %v143 = vld [vmem:[#allocation4 + $0x180] sm:$0xff]
    %v144 = vld [vmem:[#allocation4 + $0x188] sm:$0xff]
    %v145 = vld [vmem:[#allocation4 + $0x190] sm:$0xff]
    %v146 = vld [vmem:[#allocation4 + $0x198] sm:$0xff]
    %v147 = vld [vmem:[#allocation4 + $0x1a0] sm:$0xff]
    %v148 = vld [vmem:[#allocation4 + $0x1a8] sm:$0xff]
    %v149 = vld [vmem:[#allocation4 + $0x1b0] sm:$0xff]
    %v150 = vld [vmem:[#allocation4 + $0x1b8] sm:$0xff]
    %v151 = vld [vmem:[#allocation4 + $0x1c0] sm:$0xff]
    %v152 = vld [vmem:[#allocation4 + $0x1c8] sm:$0xff]
    %v153 = vld [vmem:[#allocation4 + $0x1d0] sm:$0xff]
    %v154 = vld [vmem:[#allocation4 + $0x1d8] sm:$0xff]
    %v155 = vld [vmem:[#allocation4 + $0x1e0] sm:$0xff]
    %v156 = vld [vmem:[#allocation4 + $0x1e8] sm:$0xff]
    %v157 = vld [vmem:[#allocation4 + $0x1f0] sm:$0xff]
    %v158 = vld [vmem:[#allocation4 + $0x1f8] sm:$0xff]
    %v159 = vld [vmem:[#allocation6] sm:$0x3]
    %v161 = vperm.slane %v159, 0
    %v162 = vperm.slane %v159, 1
    %165 = vmatpush.msra.mxu0 %v125
    %166 = vmatpush.msra.mxu0 %v123
    %167 = vmatpush.msra.mxu0 %v121
    %168 = vmatpush.msra.mxu0 %v119
    %169 = vmatpush.msra.mxu0 %v117
    %170 = vmatpush.msra.mxu0 %v115
    %171 = vmatpush.msra.mxu0 %v113
    %172 = vmatpush.msra.mxu0 %v111
    %173 = vmatpush.msra.mxu0 %v109
    %174 = vmatpush.msra.mxu0 %v107
    %175 = vmatpush.msra.mxu0 %v105
    %176 = vmatpush.msra.mxu0 %v103
    %177 = vmatpush.msra.mxu0 %v101
    %178 = vmatpush.msra.mxu0 %v99
    %179 = vmatpush.msra.mxu0 %v97
    %180 = vmatpush.msra.mxu0 %v95
    %181 = vmatmul.f32.gmra.mxu0 %v79
    %v182 = vpop.f32.mrf.mxu0
    %v183 = vadd.f32 %v161, %v182
    %184 = vmatmul.f32.gmra.mxu0 %v81
    %v185 = vpop.f32.mrf.mxu0
    %v186 = vadd.f32 %v161, %v185
    %187 = vmatmul.f32.gmra.mxu0 %v83
    %v188 = vpop.f32.mrf.mxu0
    %v189 = vadd.f32 %v161, %v188
    %190 = vmatmul.f32.gmra.mxu0 %v85
    %v191 = vpop.f32.mrf.mxu0
    %v192 = vadd.f32 %v161, %v191
    %193 = vmatmul.f32.gmra.mxu0 %v87
    %v194 = vpop.f32.mrf.mxu0
    %v195 = vadd.f32 %v161, %v194
    %196 = vmatmul.f32.gmra.mxu0 %v89
    %v197 = vpop.f32.mrf.mxu0
    %v198 = vadd.f32 %v161, %v197
    %199 = vmatmul.f32.gmra.mxu0 %v91
    %v200 = vpop.f32.mrf.mxu0
    %v201 = vadd.f32 %v161, %v200
    %202 = vmatmul.f32.gmra.mxu0 %v93
    %v203 = vpop.f32.mrf.mxu0
    %v204 = vadd.f32 %v161, %v203
    %205 = vdwg.mxu0
    %206 = vmatpush.msra.mxu0 %v157
    %207 = vmatpush.msra.mxu0 %v155
    %208 = vmatpush.msra.mxu0 %v153
    %209 = vmatpush.msra.mxu0 %v151
    %210 = vmatpush.msra.mxu0 %v149
    %211 = vmatpush.msra.mxu0 %v147
    %212 = vmatpush.msra.mxu0 %v145
    %213 = vmatpush.msra.mxu0 %v143
    %214 = vmatpush.msra.mxu0 %v141
    %215 = vmatpush.msra.mxu0 %v139
    %216 = vmatpush.msra.mxu0 %v137
    %217 = vmatpush.msra.mxu0 %v135
    %218 = vmatpush.msra.mxu0 %v133
    %219 = vmatpush.msra.mxu0 %v131
    %220 = vmatpush.msra.mxu0 %v129
    %221 = vmatpush.msra.mxu0 %v127
    %222 = vmatmul.f32.gmra.mxu0 %v80
    %v223 = vpop.f32.mrf.mxu0
    %v224 = vadd.f32 %v183, %v223
    %225 = vmatmul.f32.gmra.mxu0 %v82
    %v226 = vpop.f32.mrf.mxu0
    %v227 = vadd.f32 %v186, %v226
    %228 = vmatmul.f32.gmra.mxu0 %v84
    %v229 = vpop.f32.mrf.mxu0
    %v230 = vadd.f32 %v189, %v229
    %231 = vmatmul.f32.gmra.mxu0 %v86
    %v232 = vpop.f32.mrf.mxu0
    %v233 = vadd.f32 %v192, %v232
    %234 = vmatmul.f32.gmra.mxu0 %v88
    %v235 = vpop.f32.mrf.mxu0
    %v236 = vadd.f32 %v195, %v235
    %237 = vmatmul.f32.gmra.mxu0 %v90
    %v238 = vpop.f32.mrf.mxu0
    %v239 = vadd.f32 %v198, %v238
    %240 = vmatmul.f32.gmra.mxu0 %v92
    %v241 = vpop.f32.mrf.mxu0
    %v242 = vadd.f32 %v201, %v241
    %243 = vmatmul.f32.gmra.mxu0 %v94
    %v244 = vpop.f32.mrf.mxu0
    %v245 = vadd.f32 %v204, %v244
    %246 = vdwg.mxu0
    %247 = vmatpush.msra.mxu0 %v126
    %248 = vmatpush.msra.mxu0 %v124
    %249 = vmatpush.msra.mxu0 %v122
    %250 = vmatpush.msra.mxu0 %v120
    %251 = vmatpush.msra.mxu0 %v118
    %252 = vmatpush.msra.mxu0 %v116
    %253 = vmatpush.msra.mxu0 %v114
    %254 = vmatpush.msra.mxu0 %v112
    %255 = vmatpush.msra.mxu0 %v110
    %256 = vmatpush.msra.mxu0 %v108
    %257 = vmatpush.msra.mxu0 %v106
    %258 = vmatpush.msra.mxu0 %v104
    %259 = vmatpush.msra.mxu0 %v102
    %260 = vmatpush.msra.mxu0 %v100
    %261 = vmatpush.msra.mxu0 %v98
    %262 = vmatpush.msra.mxu0 %v96
    %263 = vmatmul.f32.gmra.mxu0 %v79
    %v264 = vpop.f32.mrf.mxu0
    %v265 = vadd.f32 %v162, %v264
    %266 = vmatmul.f32.gmra.mxu0 %v81
    %v267 = vpop.f32.mrf.mxu0
    %v268 = vadd.f32 %v162, %v267
    %269 = vmatmul.f32.gmra.mxu0 %v83
    %v270 = vpop.f32.mrf.mxu0
    %v271 = vadd.f32 %v162, %v270
    %272 = vmatmul.f32.gmra.mxu0 %v85
    %v273 = vpop.f32.mrf.mxu0
    %v274 = vadd.f32 %v162, %v273
    %275 = vmatmul.f32.gmra.mxu0 %v87
    %v276 = vpop.f32.mrf.mxu0
    %v277 = vadd.f32 %v162, %v276
    %278 = vmatmul.f32.gmra.mxu0 %v89
    %v279 = vpop.f32.mrf.mxu0
    %v280 = vadd.f32 %v162, %v279
    %281 = vmatmul.f32.gmra.mxu0 %v91
    %v282 = vpop.f32.mrf.mxu0
    %v283 = vadd.f32 %v162, %v282
    %284 = vmatmul.f32.gmra.mxu0 %v93
    %v285 = vpop.f32.mrf.mxu0
    %v286 = vadd.f32 %v162, %v285
    %287 = vdwg.mxu0
    %288 = vmatpush.msra.mxu0 %v158
    %289 = vmatpush.msra.mxu0 %v156
    %290 = vmatpush.msra.mxu0 %v154
    %291 = vmatpush.msra.mxu0 %v152
    %292 = vmatpush.msra.mxu0 %v150
    %293 = vmatpush.msra.mxu0 %v148
    %294 = vmatpush.msra.mxu0 %v146
    %295 = vmatpush.msra.mxu0 %v144
    %296 = vmatpush.msra.mxu0 %v142
    %297 = vmatpush.msra.mxu0 %v140
    %298 = vmatpush.msra.mxu0 %v138
    %299 = vmatpush.msra.mxu0 %v136
    %300 = vmatpush.msra.mxu0 %v134
    %301 = vmatpush.msra.mxu0 %v132
    %302 = vmatpush.msra.mxu0 %v130
    %303 = vmatpush.msra.mxu0 %v128
    %304 = vmatmul.f32.gmra.mxu0 %v80
    %v305 = vpop.f32.mrf.mxu0
    %v306 = vadd.f32 %v265, %v305
    %307 = vmatmul.f32.gmra.mxu0 %v82
    %v308 = vpop.f32.mrf.mxu0
    %v309 = vadd.f32 %v268, %v308
    %310 = vmatmul.f32.gmra.mxu0 %v84
    %v311 = vpop.f32.mrf.mxu0
    %v312 = vadd.f32 %v271, %v311
    %313 = vmatmul.f32.gmra.mxu0 %v86
    %v314 = vpop.f32.mrf.mxu0
    %v315 = vadd.f32 %v274, %v314
    %316 = vmatmul.f32.gmra.mxu0 %v88
    %v317 = vpop.f32.mrf.mxu0
    %v318 = vadd.f32 %v277, %v317
    %319 = vmatmul.f32.gmra.mxu0 %v90
    %v320 = vpop.f32.mrf.mxu0
    %v321 = vadd.f32 %v280, %v320
    %322 = vmatmul.f32.gmra.mxu0 %v92
    %v323 = vpop.f32.mrf.mxu0
    %v324 = vadd.f32 %v283, %v323
    %325 = vmatmul.f32.gmra.mxu0 %v94
    %v326 = vpop.f32.mrf.mxu0
    %v327 = vadd.f32 %v286, %v326
    %328 = vdwg.mxu0
    %v329 = vtanh.pop %v224
    %v330 = vtanh.pop %v227
    %v331 = vtanh.pop %v230
    %v332 = vtanh.pop %v233
    %v333 = vtanh.pop %v236
    %v334 = vtanh.pop %v239
    %v335 = vtanh.pop %v242
    %v336 = vtanh.pop %v245
    %v337 = vmul.f32 %v306, 0.5
    %v338 = vmul.f32 %v309, 0.5
    %v339 = vmul.f32 %v312, 0.5
    %v340 = vmul.f32 %v315, 0.5
    %v341 = vmul.f32 %v318, 0.5
    %v342 = vmul.f32 %v321, 0.5
    %v343 = vmul.f32 %v324, 0.5
    %v344 = vmul.f32 %v327, 0.5
    %v345 = vtanh.pop %v337
    %v346 = vtanh.pop %v338
    %v347 = vtanh.pop %v339
    %v348 = vtanh.pop %v340
    %v349 = vtanh.pop %v341
    %v350 = vtanh.pop %v342
    %v351 = vtanh.pop %v343
    %v352 = vtanh.pop %v344
    %v353 = vmul.f32 %v345, 0.5
    %v354 = vmul.f32 %v346, 0.5
    %v355 = vmul.f32 %v347, 0.5
    %v356 = vmul.f32 %v348, 0.5
    %v357 = vmul.f32 %v349, 0.5
    %v358 = vmul.f32 %v350, 0.5
    %v359 = vmul.f32 %v351, 0.5
    %v360 = vmul.f32 %v352, 0.5
    %v361 = vadd.f32 %v353, 0.5
    %v362 = vadd.f32 %v354, 0.5
    %v363 = vadd.f32 %v355, 0.5
    %v364 = vadd.f32 %v356, 0.5
    %v365 = vadd.f32 %v357, 0.5
    %v366 = vadd.f32 %v358, 0.5
    %v367 = vadd.f32 %v359, 0.5
    %v368 = vadd.f32 %v360, 0.5
    %v369 = vmul.f32 %v329, %v361
    %v370 = vmul.f32 %v330, %v362
    %v371 = vmul.f32 %v331, %v363
    %v372 = vmul.f32 %v332, %v364
    %v373 = vmul.f32 %v333, %v365
    %v374 = vmul.f32 %v334, %v366
    %v375 = vmul.f32 %v335, %v367
    %v376 = vmul.f32 %v336, %v368
    %v377 = vld [vmem:[#allocation7] sm:$0xf]
    %v378 = vld [vmem:[%s4] sm:$0x1]
    %v380 = vperm.slane %v378, 0
    %382 = vmatpush.xpose.msra.mxu0 0.0
    %383 = vmatpush.xpose.msra.mxu0 0.0
    %384 = vmatpush.xpose.msra.mxu0 0.0
    %385 = vmatpush.xpose.msra.mxu0 0.0
    %386 = vmatpush.xpose.msra.mxu0 0.0
    %387 = vmatpush.xpose.msra.mxu0 0.0
    %388 = vmatpush.xpose.msra.mxu0 0.0
    %389 = vmatpush.xpose.msra.mxu0 0.0
    %390 = vmatpush.xpose.msra.mxu0 0.0
    %391 = vmatpush.xpose.msra.mxu0 0.0
    %392 = vmatpush.xpose.msra.mxu0 0.0
    %393 = vmatpush.xpose.msra.mxu0 0.0
    %394 = vmatpush.xpose.msra.mxu0 0.0
    %395 = vmatpush.xpose.msra.mxu0 0.0
    %396 = vmatpush.xpose.msra.mxu0 0.0
    %397 = vmatpush.xpose.msra.mxu0 %v377
    %398 = vmatmul.f32.gmra.mxu0 %v369
    %v399 = vpop.f32.mrf.mxu0
    %v400 = vadd.f32 %v380, %v399
    %401 = vmatmul.f32.gmra.mxu0 %v370
    %v402 = vpop.f32.mrf.mxu0
    %v403 = vadd.f32 %v380, %v402
    %404 = vmatmul.f32.gmra.mxu0 %v371
    %v405 = vpop.f32.mrf.mxu0
    %v406 = vadd.f32 %v380, %v405
    %407 = vmatmul.f32.gmra.mxu0 %v372
    %v408 = vpop.f32.mrf.mxu0
    %v409 = vadd.f32 %v380, %v408
    %410 = vmatmul.f32.gmra.mxu0 %v373
    %v411 = vpop.f32.mrf.mxu0
    %v412 = vadd.f32 %v380, %v411
    %413 = vmatmul.f32.gmra.mxu0 %v374
    %v414 = vpop.f32.mrf.mxu0
    %v415 = vadd.f32 %v380, %v414
    %416 = vmatmul.f32.gmra.mxu0 %v375
    %v417 = vpop.f32.mrf.mxu0
    %v418 = vadd.f32 %v380, %v417
    %419 = vmatmul.f32.gmra.mxu0 %v376
    %v420 = vpop.f32.mrf.mxu0
    %v421 = vadd.f32 %v380, %v420
    %422 = vdwg.mxu0
    %vm423 = vcmask 31744
    %424 = vst.msk [vmem:[%s5] sm:$0xff] %vm423, %v400
    %425 = vst.msk [vmem:[%s5 + $0x8] sm:$0xff] %vm423, %v403
    %426 = vst.msk [vmem:[%s5 + $0x10] sm:$0xff] %vm423, %v406
    %427 = vst.msk [vmem:[%s5 + $0x18] sm:$0xff] %vm423, %v409
    %428 = vst.msk [vmem:[%s5 + $0x20] sm:$0xff] %vm423, %v412
    %429 = vst.msk [vmem:[%s5 + $0x28] sm:$0xff] %vm423, %v415
    %430 = vst.msk [vmem:[%s5 + $0x30] sm:$0xff] %vm423, %v418
    %431 = vst.msk [vmem:[%s5 + $0x38] sm:$0xff] %vm423, %v421
    // Predicated region
    $region38: #{tpu_custom_call.1} parent=1 // pred_check
      _
    $region39: #{tpu_custom_call.1} parent=1 // pred_check_branch
      %433 = sbr.rel (0) target = $region41
    $region40: #{tpu_custom_call.1} parent=1 // pred_region
      _
    $region41: #{tpu_custom_call.1} parent=1 // pred_fallthru
      _
    // Predicated region
    $region42: #{tpu_custom_call.1} parent=1 // pred_check
      _
    $region43: #{tpu_custom_call.1} parent=1 // pred_check_branch
      %435 = sbr.rel (0) target = $region45
    $region44: #{tpu_custom_call.1} parent=1 // pred_region
      _
    $region45: #{tpu_custom_call.1} parent=1 // pred_fallthru
      _
    %436 = vsyncpa [#allocation3], 1
    %437 = vsyncpa [#allocation5], 1
    %438 = vsyncpa [#allocation8], 1

</llo_original>
